<compile_context>
chip_gen: v6e
topology: v6e:2x2x1
jax: 0.10.0
libtpu: 0.0.40
codegen_flags: <defaults>
</compile_context>

<pallas_src>
import jax
import jax.numpy as jnp
from jax import lax
from jax.experimental import pallas as pl
from jax.experimental.pallas import tpu as pltpu


def _round_up(n, m):
    return ((n + m - 1) // m) * m


def _block_diag_repeat(block, reps):
    """Block-diagonal matrix with `block` repeated `reps` times on the diagonal."""
    r, c = block.shape
    out = jnp.zeros((reps * r, reps * c), block.dtype)
    for j in range(reps):
        out = out.at[j * r:(j + 1) * r, j * c:(j + 1) * c].set(block)
    return out


def _mlp_kernel(x_ref, w1_ref, b1_ref, w2_ref, b2_ref, o_ref):
    # x_ref : (TR, 128)  lane-packed batch tile: packed row i holds original rows
    #                    4*i .. 4*i+3 (32 features each) -> fully lane-dense loads
    # w1_ref: (20, 128)  fc1 weight replicated block-diagonally 4x (VMEM-resident)
    # b1_ref: (20, 1)    fc1 bias tiled 4x (broadcast over lanes)
    # w2_ref: (4, 20)    fc2 weight replicated block-diagonally 4x
    # b2_ref: (1, 1)     fc2 bias scalar in SMEM
    # o_ref : (4, TR)    o[j, i] = model output for original row 4*i + j

    # fc1 on the MXU: contract the packed feature axis -> h[20, TR] (batch on lanes)
    h = lax.dot_general(
        w1_ref[...], x_ref[...],
        dimension_numbers=(((1,), (1,)), ((), ())),
        preferred_element_type=jnp.float32,
    )
    # bias + ReLU on the VPU
    h = jnp.maximum(h + b1_ref[...], 0.0)

    # fc2 on the (otherwise idle) MXU: y[4, TR]; only the +b2 epilogue on the VPU
    y = lax.dot_general(
        w2_ref[...], h,
        dimension_numbers=(((1,), (0,)), ((), ())),
        preferred_element_type=jnp.float32,
    ) + b2_ref[0, 0]
    o_ref[...] = y.astype(o_ref.dtype)


def dummy_model_forward(x, w1, b1, w2, b2, *, block_b=32768):
    """x: [B, 32]; w1: [5, 32]; b1: [5]; w2: [1, 5]; b2: [1] -> [B, 1]."""
    B, F = x.shape
    H, _ = w1.shape
    assert 128 % F == 0
    P = 128 // F                                   # original rows per packed row (4)

    # --- lane-pack x: (B, 32) -> (rows, 128); contiguous reshape is free.
    # Only pad when B is not a multiple of P (<= 3 extra rows); the big ragged tail
    # across the grid is handled by Pallas edge-block padding / masked stores.
    B4 = _round_up(B, P)
    if B4 != B:
        x = jnp.pad(x, ((0, B4 - B), (0, 0)))
    rows = B4 // P
    x_packed = x.reshape(rows, P * F)

    # --- weights re-laid-out for the 4-way interleave (tiny, built once in XLA).
    w1_blk = _block_diag_repeat(w1, P)             # (20, 128)
    b1_blk = jnp.tile(b1, P).reshape(P * H, 1)     # (20, 1)
    w2_blk = _block_diag_repeat(w2, P)             # (4, 20)
    b2_s = b2.reshape(1, 1)                        # (1, 1) SMEM scalar

    # --- tile selection: multiple of 128 packed rows (lane-aligned I/O), large enough
    # to amortize per-step overhead, and >=2 grid steps for moderate batches so the
    # "parallel" axis can use both v7x TensorCores.
    block_b = _round_up(max(block_b, P * 128), P * 128)   # multiple of 512 rows
    tile_cap = block_b // P
    half_rows = _round_up(pl.cdiv(rows, 2), 128)
    tile_rows = max(128, min(tile_cap, half_rows))
    grid = (pl.cdiv(rows, tile_rows),)

    # x + out double buffers; only raise the scoped VMEM limit if we exceed the
    # smallest default (v5e ~16 MiB).
    cp_kwargs = dict(dimension_semantics=("parallel",))
    est_vmem = 2 * tile_rows * (P * F + P) * 4 + (2 << 20)
    if est_vmem > (16 << 20):
        cp_kwargs["vmem_limit_bytes"] = int(est_vmem)

    cost = pl.CostEstimate(
        flops=2 * B4 * (F * H + H),
        transcendentals=0,
        bytes_accessed=B4 * F * 4 + B4 * 4,
    )

    out = pl.pallas_call(
        _mlp_kernel,
        out_shape=jax.ShapeDtypeStruct((P, rows), x.dtype),
        grid=grid,
        in_specs=[
            pl.BlockSpec((tile_rows, P * F), lambda i: (i, 0)),  # x: batch-tiled
            pl.BlockSpec((P * H, P * F), lambda i: (0, 0)),      # w1: VMEM-resident
            pl.BlockSpec((P * H, 1), lambda i: (0, 0)),          # b1: VMEM-resident
            pl.BlockSpec((P, P * H), lambda i: (0, 0)),          # w2: VMEM-resident
            pl.BlockSpec(memory_space=pltpu.SMEM),               # b2: SMEM scalar
        ],
        out_specs=pl.BlockSpec((P, tile_rows), lambda i: (0, i)),  # lane-dense out
        compiler_params=pltpu.CompilerParams(**cp_kwargs),
        cost_estimate=cost,
    )(x_packed, w1_blk, b1_blk, w2_blk, b2_s)

    # out[j, i] corresponds to original row P*i + j; un-interleave (tiny: B*4 bytes)
    # and drop the <=3 padded rows.
    return out.T.reshape(B4, 1)[:B]


def _reference(x, w1, b1, w2, b2):
    return jnp.maximum(x @ w1.T + b1, 0.0) @ w2.T + b2


def _init_params(key):
    # Deterministic init mimicking nn.Linear shapes: W (out, in), b (out,)
    k1, k2, k3, k4 = jax.random.split(key, 4)
    w1 = jax.random.uniform(k1, (5, 32), jnp.float32, -0.1, 0.1)
    b1 = jax.random.uniform(k2, (5,), jnp.float32, -0.1, 0.1)
    w2 = jax.random.uniform(k3, (1, 5), jnp.float32, -0.1, 0.1)
    b2 = jax.random.uniform(k4, (1,), jnp.float32, -0.1, 0.1)
    return w1, b1, w2, b2


if __name__ == "__main__":
    key = jax.random.PRNGKey(0)
    k_x, k_x2, k_p = jax.random.split(key, 3)
    w1, b1, w2, b2 = _init_params(k_p)

    # Small-batch case (single packed tile, default large block).
    B = 8
    x = jax.random.normal(k_x, (B, 32), jnp.float32)
    out = jax.block_until_ready(dummy_model_forward(x, w1, b1, w2, b2))
    ref = _reference(x, w1, b1, w2, b2)
    assert out.shape == (B, 1)
    assert jnp.allclose(out, ref, atol=1e-5), "mismatch vs reference (B=8)"

    # Multi-tile case: ragged packed-row tail across the grid + B not divisible by 4.
    B2 = 1003
    x2 = jax.random.normal(k_x2, (B2, 32), jnp.float32)
    out2 = jax.block_until_ready(
        dummy_model_forward(x2, w1, b1, w2, b2, block_b=512))
    ref2 = _reference(x2, w1, b1, w2, b2)
    assert out2.shape == (B2, 1)
    assert jnp.allclose(out2, ref2, atol=1e-5), "mismatch vs reference (B=1003)"

    print("KERNEL_OK")
</pallas_src>

<mosaic_0001>
module attributes {stable_mosaic.version = 11 : i64} {
  func.func @_mlp_kernel(%arg0: i32, %arg1: memref<128x128xf32, #tpu.memory_space<vmem>>, %arg2: memref<20x128xf32, #tpu.memory_space<vmem>>, %arg3: memref<20x1xf32, #tpu.memory_space<vmem>>, %arg4: memref<4x20xf32, #tpu.memory_space<vmem>>, %arg5: memref<1x1xf32, #tpu.memory_space<smem>>, %arg6: memref<4x128xf32, #tpu.memory_space<vmem>>) attributes {dimension_semantics = [#tpu.dimension_semantics<parallel>], iteration_bounds = array<i64: 1>, scalar_prefetch = 0 : i64, scratch_operands = 0 : i64, tpu.core_type = #tpu.core_type<tc>, window_params = [{transform_indices = @transform_0, window_bounds = array<i64: 128, 128>}, {pipeline_mode = #tpu.pipeline_mode<synchronous>, transform_indices = @transform_1, window_bounds = array<i64: 20, 128>}, {pipeline_mode = #tpu.pipeline_mode<synchronous>, transform_indices = @transform_2, window_bounds = array<i64: 20, 1>}, {pipeline_mode = #tpu.pipeline_mode<synchronous>, transform_indices = @transform_3, window_bounds = array<i64: 4, 20>}, {transform_indices = @transform_4, window_bounds = array<i64: 1, 1>}, {transform_indices = @transform_5, window_bounds = array<i64: 4, 128>}]} {
    %c0 = arith.constant 0 : index
    %c0_0 = arith.constant 0 : index
    %0 = vector.load %arg2[%c0, %c0_0] : memref<20x128xf32, #tpu.memory_space<vmem>>, vector<20x128xf32>
    %c0_1 = arith.constant 0 : index
    %c0_2 = arith.constant 0 : index
    %1 = vector.load %arg1[%c0_1, %c0_2] : memref<128x128xf32, #tpu.memory_space<vmem>>, vector<128x128xf32>
    %cst = arith.constant dense<0.000000e+00> : vector<20x128xf32>
    %2 = tpu.matmul %0, %1, %cst {dimension_numbers = #tpu.dot_dimension_numbers<[1], [1], [0], [0], [0, 0, 1, 0], [], []>} : vector<20x128xf32>, vector<128x128xf32>, vector<20x128xf32> -> vector<20x128xf32>
    %c0_3 = arith.constant 0 : index
    %c0_4 = arith.constant 0 : index
    %3 = vector.load %arg3[%c0_3, %c0_4] : memref<20x1xf32, #tpu.memory_space<vmem>>, vector<20x1xf32>
    %4 = vector.broadcast %3 : vector<20x1xf32> to vector<20x128xf32>
    %5 = arith.addf %2, %4 : vector<20x128xf32>
    %cst_5 = arith.constant 0.000000e+00 : f32
    %6 = vector.broadcast %cst_5 : f32 to vector<20x128xf32>
    %7 = arith.maximumf %5, %6 : vector<20x128xf32>
    %c0_6 = arith.constant 0 : index
    %c0_7 = arith.constant 0 : index
    %8 = vector.load %arg4[%c0_6, %c0_7] : memref<4x20xf32, #tpu.memory_space<vmem>>, vector<4x20xf32>
    %cst_8 = arith.constant dense<0.000000e+00> : vector<4x128xf32>
    %9 = tpu.matmul %8, %7, %cst_8 {dimension_numbers = #tpu.dot_dimension_numbers<[1], [0], [0], [1], [0, 0, 1, 1], [], []>} : vector<4x20xf32>, vector<20x128xf32>, vector<4x128xf32> -> vector<4x128xf32>
    %c0_9 = arith.constant 0 : index
    %c0_10 = arith.constant 0 : index
    %10 = memref.load %arg5[%c0_9, %c0_10] : memref<1x1xf32, #tpu.memory_space<smem>>
    %11 = vector.broadcast %10 : f32 to vector<4x128xf32>
    %12 = arith.addf %9, %11 : vector<4x128xf32>
    %c0_11 = arith.constant 0 : index
    %c0_12 = arith.constant 0 : index
    %13 = vector.load %arg6[%c0_11, %c0_12] : memref<4x128xf32, #tpu.memory_space<vmem>>, vector<4x128xf32>
    tpu.vector_store %arg6[%c0_11, %c0_12], %12 {strides = array<i32>} : memref<4x128xf32, #tpu.memory_space<vmem>>, vector<4x128xf32>,
    return
  }
  func.func @transform_0(%arg0: i32) -> (i32, i32) {
    %c0_i32 = arith.constant 0 : i32
    %c0_i32_0 = arith.constant 0 : i32
    return %arg0, %c0_i32 : i32, i32
  }
  func.func @transform_1(%arg0: i32) -> (i32, i32) {
    %c0_i32 = arith.constant 0 : i32
    %c0_i32_0 = arith.constant 0 : i32
    %c0_i32_1 = arith.constant 0 : i32
    return %c0_i32, %c0_i32_0 : i32, i32
  }
  func.func @transform_2(%arg0: i32) -> (i32, i32) {
    %c0_i32 = arith.constant 0 : i32
    %c0_i32_0 = arith.constant 0 : i32
    %c0_i32_1 = arith.constant 0 : i32
    return %c0_i32, %c0_i32_0 : i32, i32
  }
  func.func @transform_3(%arg0: i32) -> (i32, i32) {
    %c0_i32 = arith.constant 0 : i32
    %c0_i32_0 = arith.constant 0 : i32
    %c0_i32_1 = arith.constant 0 : i32
    return %c0_i32, %c0_i32_0 : i32, i32
  }
  func.func @transform_4(%arg0: i32) -> (i32, i32) {
    %c0_i32 = arith.constant 0 : i32
    %c0_i32_0 = arith.constant 0 : i32
    %c0_i32_1 = arith.constant 0 : i32
    return %c0_i32, %c0_i32_0 : i32, i32
  }
  func.func @transform_5(%arg0: i32) -> (i32, i32) {
    %c0_i32 = arith.constant 0 : i32
    %c0_i32_0 = arith.constant 0 : i32
    return %c0_i32, %arg0 : i32, i32
  }
}

</mosaic_0001>

<llo_original>
// kernel: tpu_custom_call.1
$region0: #{tpu_custom_call.1}
  #allocation0 [shape = 'u32[]', space=smem, size = 0x4, offset = 0x4, fixed_abs, tag = 'smem constant byte address 0x4 - core index']
  #allocation1 [shape = 'u32[144,128]{1,0:T(1,128)}', space=vmem, size = 0x12000, scoped, tag = 'internal scratch']
  #allocation2 [shape = 'f32[1,1]{1,0:T(1,128)S(6)}', space=smem, size = 0x200, scoped, tag = 'scoped memory for tpu_custom_call.1']
  %s0 = inlined_call_operand.hbm [shape: f32[2,128], index: 0, kind: input, shape index: {}]
  %s1 = inlined_call_operand.vmem [shape: f32[20,128], index: 1, kind: input, shape index: {}]
  %s2 = inlined_call_operand.vmem [shape: f32[20,1], index: 2, kind: input, shape index: {}]
  %s3 = inlined_call_operand.vmem [shape: f32[4,20], index: 3, kind: input, shape index: {}]
  %s4 = inlined_call_operand.<no memory space> [shape: f32[1,1], index: 4, kind: input, shape index: {}]
  %s5 = inlined_call_operand.vmem [shape: f32[4,2], index: 5, kind: output, shape index: {}]
  %s6 = sld [smem:[#allocation0]]
  $region34: #{tpu_custom_call.1} parent=0
    _
  %s8 = ssub.s32 1, %s6
  %s9 = scalar_select 0, %s8, %s6
  %10 = sst [smem:[#allocation2]] %s4
  $region1: #{tpu_custom_call.1} parent=0
    #allocation3 [shape = 'u8[65536]{0}', space=vmem, size = 0x10000, scoped, tag = 'input window, operand 0, single buffered']
    #allocation4 [shape = 's32[1]{0}', space=sflag, size = 0x4, scoped, tag = 'scoped memory for tpu_custom_call.1']
    %11 = vsyncpa [#allocation4], 0
    // Predicated region
    $region2: #{tpu_custom_call.1} parent=1 // pred_check
      _
    $region3: #{tpu_custom_call.1} parent=1 // pred_check_branch
      %13 = sbr.rel (0) target = $region5
    $region4: #{tpu_custom_call.1} parent=1 // pred_region
      %s15 = ssub.s32 2048, 32
      %16 = vsyncadd [#allocation4], %s15
      %s17 = sshll.u32 [#allocation3], 4
      %s18 = int_to_ptr.vmem [resolvable:$true] %s17
      %23 = dma.hbm_to_vmem [thread:$0]  %s0, 32, %s18, [#allocation4], 32, 32, 2
    $region5: #{tpu_custom_call.1} parent=1 // pred_fallthru
      _
    // Predicated region
    $region6: #{tpu_custom_call.1} parent=1 // pred_check
      _
    $region7: #{tpu_custom_call.1} parent=1 // pred_check_branch
      %25 = sbr.rel (0) target = $region9
    $region8: #{tpu_custom_call.1} parent=1 // pred_region
      _
    $region9: #{tpu_custom_call.1} parent=1 // pred_fallthru
      _
    // Predicated region
    $region10: #{tpu_custom_call.1} parent=1 // pred_check
      _
    $region11: #{tpu_custom_call.1} parent=1 // pred_check_branch
      %27 = sbr.rel (0) target = $region13
    $region12: #{tpu_custom_call.1} parent=1 // pred_region
      _
    $region13: #{tpu_custom_call.1} parent=1 // pred_fallthru
      _
    // Predicated region
    $region14: #{tpu_custom_call.1} parent=1 // pred_check
      _
    $region15: #{tpu_custom_call.1} parent=1 // pred_check_branch
      %29 = sbr.rel (0) target = $region17
    $region16: #{tpu_custom_call.1} parent=1 // pred_region
      _
    $region17: #{tpu_custom_call.1} parent=1 // pred_fallthru
      _
    // Predicated region
    $region18: #{tpu_custom_call.1} parent=1 // pred_check
      _
    $region19: #{tpu_custom_call.1} parent=1 // pred_check_branch
      %31 = sbr.rel (0) target = $region21
    $region20: #{tpu_custom_call.1} parent=1 // pred_region
      _
    $region21: #{tpu_custom_call.1} parent=1 // pred_fallthru
      _
    // Predicated region
    $region22: #{tpu_custom_call.1} parent=1 // pred_check
      _
    $region23: #{tpu_custom_call.1} parent=1 // pred_check_branch
      %33 = sbr.rel (0) target = $region25
    $region24: #{tpu_custom_call.1} parent=1 // pred_region
      %34 = dma.done [#allocation4], 2048
    $region25: #{tpu_custom_call.1} parent=1 // pred_fallthru
      _
    %v35 = vld [vmem:[%s1] sm:$0xff]
    %v36 = vld [vmem:[%s1 + $0x8] sm:$0xff]
    %v37 = vld [vmem:[%s1 + $0x10] sm:$0xf]
    %v38 = vld [vmem:[#allocation3] sm:$0xff]
    %v39 = vld [vmem:[#allocation3 + $0x8] sm:$0xff]
    %v40 = vld [vmem:[#allocation3 + $0x10] sm:$0xff]
    %v41 = vld [vmem:[#allocation3 + $0x18] sm:$0xff]
    %v42 = vld [vmem:[#allocation3 + $0x20] sm:$0xff]
    %v43 = vld [vmem:[#allocation3 + $0x28] sm:$0xff]
    %v44 = vld [vmem:[#allocation3 + $0x30] sm:$0xff]
    %v45 = vld [vmem:[#allocation3 + $0x38] sm:$0xff]
    %v46 = vld [vmem:[#allocation3 + $0x40] sm:$0xff]
    %v47 = vld [vmem:[#allocation3 + $0x48] sm:$0xff]
    %v48 = vld [vmem:[#allocation3 + $0x50] sm:$0xff]
    %v49 = vld [vmem:[#allocation3 + $0x58] sm:$0xff]
    %v50 = vld [vmem:[#allocation3 + $0x60] sm:$0xff]
    %v51 = vld [vmem:[#allocation3 + $0x68] sm:$0xff]
    %v52 = vld [vmem:[#allocation3 + $0x70] sm:$0xff]
    %v53 = vld [vmem:[#allocation3 + $0x78] sm:$0xff]
    %v54 = vld [vmem:[%s2] sm:$0xff]
    %v55 = vld [vmem:[%s2 + $0x8] sm:$0xff]
    %v56 = vld [vmem:[%s2 + $0x10] sm:$0xf]
    %58 = vset.pattern.permute.xlu0 0
    %59 = vperm.xlu0 %58, %v54
    %v60 = vpop.permute.xlu0 %59
    %63 = vset.pattern.permute.xlu0 0
    %64 = vperm.xlu0 %63, %v55
    %v65 = vpop.permute.xlu0 %64
    %68 = vset.pattern.permute.xlu0 0
    %69 = vperm.xlu0 %68, %v56
    %v70 = vpop.permute.xlu0 %69
    %72 = vmatprep.subr.mxu0 0.0
    %73 = vmatpush1.xpose.msra.mxu0 %v53
    %74 = vmatprep.subr.mxu0 0.0
    %75 = vmatpush1.xpose.msra.mxu0 %v52
    %76 = vmatprep.subr.mxu0 0.0
    %77 = vmatpush1.xpose.msra.mxu0 %v51
    %78 = vmatprep.subr.mxu0 0.0
    %79 = vmatpush1.xpose.msra.mxu0 %v50
    %80 = vmatprep.subr.mxu0 0.0
    %81 = vmatpush1.xpose.msra.mxu0 %v49
    %82 = vmatprep.subr.mxu0 0.0
    %83 = vmatpush1.xpose.msra.mxu0 %v48
    %84 = vmatprep.subr.mxu0 0.0
    %85 = vmatpush1.xpose.msra.mxu0 %v47
    %86 = vmatprep.subr.mxu0 0.0
    %87 = vmatpush1.xpose.msra.mxu0 %v46
    %88 = vmatprep.subr.mxu0 0.0
    %89 = vmatpush1.xpose.msra.mxu0 %v45
    %90 = vmatprep.subr.mxu0 0.0
    %91 = vmatpush1.xpose.msra.mxu0 %v44
    %92 = vmatprep.subr.mxu0 0.0
    %93 = vmatpush1.xpose.msra.mxu0 %v43
    %94 = vmatprep.subr.mxu0 0.0
    %95 = vmatpush1.xpose.msra.mxu0 %v42
    %96 = vmatprep.subr.mxu0 0.0
    %97 = vmatpush1.xpose.msra.mxu0 %v41
    %98 = vmatprep.subr.mxu0 0.0
    %99 = vmatpush1.xpose.msra.mxu0 %v40
    %100 = vmatprep.subr.mxu0 0.0
    %101 = vmatpush1.xpose.msra.mxu0 %v39
    %102 = vmatprep.subr.mxu0 0.0
    %103 = vmatpush1.xpose.msra.mxu0 %v38
    %104 = vmatprep.subr.mxu0 0.0
    %105 = vmatpush2.xpose.msra.mxu0 0.0
    %106 = vmatprep.subr.mxu0 0.0
    %107 = vmatpush2.xpose.msra.mxu0 0.0
    %108 = vmatprep.subr.mxu0 0.0
    %109 = vmatpush2.xpose.msra.mxu0 0.0
    %110 = vmatprep.subr.mxu0 0.0
    %111 = vmatpush2.xpose.msra.mxu0 0.0
    %112 = vmatprep.subr.mxu0 0.0
    %113 = vmatpush2.xpose.msra.mxu0 0.0
    %114 = vmatprep.subr.mxu0 0.0
    %115 = vmatpush2.xpose.msra.mxu0 0.0
    %116 = vmatprep.subr.mxu0 0.0
    %117 = vmatpush2.xpose.msra.mxu0 0.0
    %118 = vmatprep.subr.mxu0 0.0
    %119 = vmatpush2.xpose.msra.mxu0 0.0
    %120 = vmatprep.subr.mxu0 0.0
    %121 = vmatpush2.xpose.msra.mxu0 0.0
    %122 = vmatprep.subr.mxu0 0.0
    %123 = vmatpush2.xpose.msra.mxu0 0.0
    %124 = vmatprep.subr.mxu0 0.0
    %125 = vmatpush2.xpose.msra.mxu0 0.0
    %126 = vmatprep.subr.mxu0 0.0
    %127 = vmatpush2.xpose.msra.mxu0 0.0
    %128 = vmatprep.subr.mxu0 0.0
    %129 = vmatpush2.xpose.msra.mxu0 0.0
    %130 = vmatprep.subr.mxu0 0.0
    %131 = vmatpush2.xpose.msra.mxu0 0.0
    %132 = vmatprep.subr.mxu0 0.0
    %133 = vmatpush2.xpose.msra.mxu0 0.0
    %134 = vmatprep.subr.mxu0 0.0
    %135 = vmatpush2.xpose.msra.mxu0 0.0
    %136 = vmatprep.mubr.f32.mxu0 0.0
    %137 = vmatmul.mubr.f32.gmra.mxu0 %v35
    %v138 = vpop.f32.mrf.mxu0
    %v139 = vadd.f32 %v60, %v138
    %v140 = vpop.f32.mrf.mxu0
    %141 = vmatprep.mubr.f32.mxu0 0.0
    %142 = vmatmul.mubr.f32.gmra.mxu0 %v36
    %v143 = vpop.f32.mrf.mxu0
    %v144 = vadd.f32 %v65, %v143
    %v145 = vpop.f32.mrf.mxu0
    %146 = vmatprep.mubr.f32.mxu0 0.0
    %147 = vmatmul.mubr.f32.gmra.mxu0 %v37
    %v148 = vpop.f32.mrf.mxu0
    %v149 = vadd.f32 %v70, %v148
    %v150 = vpop.f32.mrf.mxu0
    %151 = vdwg.mxu0
    %v152 = vmax.f32 %v139, 0.0
    %v153 = vmax.f32 %v144, 0.0
    %v154 = vmax.f32 %v149, 0.0
    %v155 = vld [vmem:[%s3] sm:$0xf]
    %s156 = sld [smem:[#allocation2]]
    %v157 = vstv %s156
    %vm158 = vcmask 162816
    %v160 = vsel %vm158, %v155, 0
    %vm162 = vcmask 1043456
    %v164 = vsel %vm162, %v154, 0
    %166 = vmatprep.subr.mxu0 0.0
    %167 = vmatpush1.msra.mxu0 0.0
    %168 = vmatprep.subr.mxu0 0.0
    %169 = vmatpush1.msra.mxu0 0.0
    %170 = vmatprep.subr.mxu0 0.0
    %171 = vmatpush1.msra.mxu0 0.0
    %172 = vmatprep.subr.mxu0 0.0
    %173 = vmatpush1.msra.mxu0 0.0
    %174 = vmatprep.subr.mxu0 0.0
    %175 = vmatpush1.msra.mxu0 0.0
    %176 = vmatprep.subr.mxu0 0.0
    %177 = vmatpush1.msra.mxu0 0.0
    %178 = vmatprep.subr.mxu0 0.0
    %179 = vmatpush1.msra.mxu0 0.0
    %180 = vmatprep.subr.mxu0 0.0
    %181 = vmatpush1.msra.mxu0 0.0
    %182 = vmatprep.subr.mxu0 0.0
    %183 = vmatpush1.msra.mxu0 0.0
    %184 = vmatprep.subr.mxu0 0.0
    %185 = vmatpush1.msra.mxu0 0.0
    %186 = vmatprep.subr.mxu0 0.0
    %187 = vmatpush1.msra.mxu0 0.0
    %188 = vmatprep.subr.mxu0 0.0
    %189 = vmatpush1.msra.mxu0 0.0
    %190 = vmatprep.subr.mxu0 0.0
    %191 = vmatpush1.msra.mxu0 0.0
    %192 = vmatprep.subr.mxu0 0.0
    %193 = vmatpush1.msra.mxu0 %v164
    %194 = vmatprep.subr.mxu0 0.0
    %195 = vmatpush1.msra.mxu0 %v153
    %196 = vmatprep.subr.mxu0 0.0
    %197 = vmatpush1.msra.mxu0 %v152
    %198 = vmatprep.subr.mxu0 0.0
    %199 = vmatpush2.msra.mxu0 0.0
    %200 = vmatprep.subr.mxu0 0.0
    %201 = vmatpush2.msra.mxu0 0.0
    %202 = vmatprep.subr.mxu0 0.0
    %203 = vmatpush2.msra.mxu0 0.0
    %204 = vmatprep.subr.mxu0 0.0
    %205 = vmatpush2.msra.mxu0 0.0
    %206 = vmatprep.subr.mxu0 0.0
    %207 = vmatpush2.msra.mxu0 0.0
    %208 = vmatprep.subr.mxu0 0.0
    %209 = vmatpush2.msra.mxu0 0.0
    %210 = vmatprep.subr.mxu0 0.0
    %211 = vmatpush2.msra.mxu0 0.0
    %212 = vmatprep.subr.mxu0 0.0
    %213 = vmatpush2.msra.mxu0 0.0
    %214 = vmatprep.subr.mxu0 0.0
    %215 = vmatpush2.msra.mxu0 0.0
    %216 = vmatprep.subr.mxu0 0.0
    %217 = vmatpush2.msra.mxu0 0.0
    %218 = vmatprep.subr.mxu0 0.0
    %219 = vmatpush2.msra.mxu0 0.0
    %220 = vmatprep.subr.mxu0 0.0
    %221 = vmatpush2.msra.mxu0 0.0
    %222 = vmatprep.subr.mxu0 0.0
    %223 = vmatpush2.msra.mxu0 0.0
    %224 = vmatprep.subr.mxu0 0.0
    %225 = vmatpush2.msra.mxu0 0.0
    %226 = vmatprep.subr.mxu0 0.0
    %227 = vmatpush2.msra.mxu0 0.0
    %228 = vmatprep.subr.mxu0 0.0
    %229 = vmatpush2.msra.mxu0 0.0
    %230 = vmatprep.mubr.f32.mxu0 0.0
    %231 = vmatmul.mubr.f32.gmra.mxu0 %v160
    %v232 = vpop.f32.mrf.mxu0
    %v233 = vadd.f32 %v157, %v232
    %v234 = vpop.f32.mrf.mxu0
    %235 = vdwg.mxu0
    %236 = vst [vmem:[%s5] sm:$0xf] %v233
    // Predicated region
    $region26: #{tpu_custom_call.1} parent=1 // pred_check
      _
    $region27: #{tpu_custom_call.1} parent=1 // pred_check_branch
      %238 = sbr.rel (0) target = $region29
    $region28: #{tpu_custom_call.1} parent=1 // pred_region
      _
    $region29: #{tpu_custom_call.1} parent=1 // pred_fallthru
      _
    // Predicated region
    $region30: #{tpu_custom_call.1} parent=1 // pred_check
      _
    $region31: #{tpu_custom_call.1} parent=1 // pred_check_branch
      %240 = sbr.rel (0) target = $region33
    $region32: #{tpu_custom_call.1} parent=1 // pred_region
      _
    $region33: #{tpu_custom_call.1} parent=1 // pred_fallthru
      _
    %241 = vsyncpa [#allocation4], 1

</llo_original>
